<compile_context>
chip_gen: v5e
topology: v5e:2x2
jax: 0.10.0
libtpu: 0.0.40
codegen_flags: <defaults>
</compile_context>

<pallas_src>
import functools

import jax
import jax.numpy as jnp
from jax.experimental import pallas as pl
from jax.experimental.pallas import tpu as pltpu

HIDDEN = 256  # fixed by the module definition


def _round_up(x, m):
    return ((x + m - 1) // m) * m


def _reward_mlp_kernel(z_ref, a_ref, w1z_ref, w1a_ref, b1_ref,
                       w2_ref, b2_ref, w3_ref, b3_ref, o_ref):
    """3-layer MLP for one batch tile, entirely in VMEM.

    z_ref : (TB, Dz)        a_ref : (TB, Da)
    w1z   : (Dz, 256) bf16  w1a   : (Da, 256) bf16   b1 : (1, 256) f32
    w2    : (256, 256) bf16                           b2 : (1, 256) f32
    w3    : (256, 1)  bf16                            b3 : (1, 1)  f32
    o_ref : (1, TB)   lane-dense output row (f32)
    """
    # Layer 1 (fused concat): bf16 operands on the MXU, f32 accumulation.
    zb = z_ref[...].astype(jnp.bfloat16)
    ab = a_ref[...].astype(jnp.bfloat16)
    h1 = jnp.dot(zb, w1z_ref[...], preferred_element_type=jnp.float32)
    h1 = h1 + jnp.dot(ab, w1a_ref[...], preferred_element_type=jnp.float32)
    h1 = jnp.maximum(h1 + b1_ref[...], 0.0)          # f32 bias + ReLU (VPU)

    # Layer 2.
    h2 = jnp.dot(h1.astype(jnp.bfloat16), w2_ref[...],
                 preferred_element_type=jnp.float32)
    h2 = jnp.maximum(h2 + b2_ref[...], 0.0)

    # Layer 3: Linear(256, 1) as an N=1 MXU matmul -> (TB, 1) column, then a
    # tiny (TB,1)->(1,TB) relayout so the output row stays lane-dense.
    # No (TB, 256) f32 intermediate and no large XLU transpose.
    col = jnp.dot(h2.astype(jnp.bfloat16), w3_ref[...],
                  preferred_element_type=jnp.float32)            # (TB, 1)
    out_row = jnp.transpose(col) + b3_ref[...]                   # (1, TB)
    o_ref[...] = out_row.astype(o_ref.dtype)


@functools.partial(jax.jit, static_argnames=("tile_b", "num_cores"))
def reward_model_forward(z, a, params, tile_b=512, num_cores=2):
    """Pallas implementation of RewardModel.forward(z, a) -> (B,).

    params = (w1, b1, w2, b2, w3, b3), weights as (in_features, out_features).
    tile_b must be a multiple of 128 (512 default). num_cores: TensorCores per
    chip to spread grid steps over (2 on v7x, 1 on v5e/v6e); the default of 2 is
    safe everywhere (costs at most one extra tiny grid step on single-TC chips).
    """
    assert tile_b % 128 == 0, "tile_b must be a multiple of 128"
    assert num_cores >= 1
    B, Dz = z.shape
    Da = a.shape[-1]

    w1, b1, w2, b2, w3, b3 = params
    # Split w1 for the fused concat; bf16 operands for all three MXU layers
    # (accumulation is f32 in-kernel). Biases stay f32 (VPU path).
    w1z = w1[:Dz].astype(jnp.bfloat16)
    w1a = w1[Dz:].astype(jnp.bfloat16)
    w2b = w2.astype(jnp.bfloat16)
    w3c = w3.reshape(HIDDEN, 1).astype(jnp.bfloat16)
    b1r = b1.reshape(1, HIDDEN).astype(jnp.float32)
    b2r = b2.reshape(1, HIDDEN).astype(jnp.float32)
    b3r = b3.reshape(1, 1).astype(jnp.float32)

    # Batch tiling: always a multiple of 128 (lane-dense output, regular bf16
    # packing).  Split the batch across `num_cores` grid steps when it fits in
    # a single tile (keeps both v7x TensorCores busy); cap at tile_b otherwise.
    B128 = _round_up(B, 128)
    tile = min(tile_b, max(128, _round_up(pl.cdiv(B128, num_cores), 128)))
    Bp = _round_up(B, tile)
    if Bp != B:
        # Only the small z / a inputs are padded (no (B, D) concat copy).
        z = jnp.pad(z, ((0, Bp - B), (0, 0)))
        a = jnp.pad(a, ((0, Bp - B), (0, 0)))

    grid = (Bp // tile,)

    out = pl.pallas_call(
        _reward_mlp_kernel,
        out_shape=jax.ShapeDtypeStruct((1, Bp), jnp.float32),
        grid_spec=pltpu.PrefetchScalarGridSpec(
            num_scalar_prefetch=0,
            grid=grid,
            in_specs=[
                pl.BlockSpec((tile, Dz), lambda i: (i, 0)),        # z tile
                pl.BlockSpec((tile, Da), lambda i: (i, 0)),        # a tile
                # Constant index_map -> fetched once, resident in VMEM across
                # the grid (default buffering kept; ~0.3 MB total).
                pl.BlockSpec((Dz, HIDDEN), lambda i: (0, 0)),      # w1_z
                pl.BlockSpec((Da, HIDDEN), lambda i: (0, 0)),      # w1_a
                pl.BlockSpec((1, HIDDEN), lambda i: (0, 0)),       # b1
                pl.BlockSpec((HIDDEN, HIDDEN), lambda i: (0, 0)),  # w2
                pl.BlockSpec((1, HIDDEN), lambda i: (0, 0)),       # b2
                pl.BlockSpec((HIDDEN, 1), lambda i: (0, 0)),       # w3 (column)
                pl.BlockSpec((1, 1), lambda i: (0, 0)),            # b3
            ],
            out_specs=pl.BlockSpec((1, tile), lambda i: (0, i)),   # lane-dense row
        ),
        compiler_params=pltpu.CompilerParams(
            dimension_semantics=("parallel",),   # shard grid steps across TCs (v7x)
        ),
    )(z, a, w1z, w1a, b1r, w2b, b2r, w3c, b3r)

    return out[0, :B]  # squeeze(-1), drop batch padding


def init_params(latent_dim, action_dim, key):
    """Deterministic parameter init (shapes from the module __init__), f32."""
    D = latent_dim + action_dim
    k1, k2, k3 = jax.random.split(key, 3)

    def lin(k, fan_in, fan_out):
        scale = 1.0 / jnp.sqrt(jnp.float32(fan_in))
        w = jax.random.uniform(k, (fan_in, fan_out), jnp.float32, -scale, scale)
        b = jnp.zeros((fan_out,), jnp.float32)
        return w, b

    w1, b1 = lin(k1, D, HIDDEN)
    w2, b2 = lin(k2, HIDDEN, HIDDEN)
    w3, b3 = lin(k3, HIDDEN, 1)
    return (w1, b1, w2, b2, w3, b3)


def reference_forward(z, a, params, match_kernel_precision=False):
    """Pure-JAX reference. match_kernel_precision=True mimics the kernel's
    bf16-operand / f32-accumulate matmuls."""
    w1, b1, w2, b2, w3, b3 = params
    x = jnp.concatenate([z, a], axis=-1)
    if match_kernel_precision:
        h = jnp.dot(x.astype(jnp.bfloat16), w1.astype(jnp.bfloat16),
                    preferred_element_type=jnp.float32) + b1
        h = jnp.maximum(h, 0.0)
        h = jnp.dot(h.astype(jnp.bfloat16), w2.astype(jnp.bfloat16),
                    preferred_element_type=jnp.float32) + b2
        h = jnp.maximum(h, 0.0)
        col = jnp.dot(h.astype(jnp.bfloat16), w3.astype(jnp.bfloat16),
                      preferred_element_type=jnp.float32)
        return col[:, 0] + b3[0]
    h = jnp.maximum(x @ w1 + b1, 0.0)
    h = jnp.maximum(h @ w2 + b2, 0.0)
    return (h @ w3 + b3)[..., 0]


if __name__ == "__main__":
    latent_dim, action_dim = 32, 8

    key = jax.random.PRNGKey(0)
    kp = jax.random.fold_in(key, 123)
    params = init_params(latent_dim, action_dim, kp)

    # Case 1: small batch (tile=128, grid=1).
    # Case 2: batch 512 (tile=256 with num_cores=2 -> grid=2, multi-tile path).
    for batch in (64, 512):
        kz, ka = jax.random.split(jax.random.fold_in(key, batch))
        z = jax.random.normal(kz, (batch, latent_dim), jnp.float32)
        a = jax.random.normal(ka, (batch, action_dim), jnp.float32)

        out = jax.block_until_ready(
            reward_model_forward(z, a, params, tile_b=512, num_cores=2))
        assert out.shape == (batch,), out.shape

        ref_matched = reference_forward(z, a, params, match_kernel_precision=True)
        ref_f32 = reference_forward(z, a, params, match_kernel_precision=False)

        assert jnp.allclose(out, ref_matched, atol=2e-3, rtol=2e-3), (
            "mismatch vs bf16-matched reference",
            float(jnp.max(jnp.abs(out - ref_matched))))
        assert jnp.allclose(out, ref_f32, atol=5e-2, rtol=5e-2), (
            "mismatch vs f32 reference",
            float(jnp.max(jnp.abs(out - ref_f32))))

    print("KERNEL_OK")
</pallas_src>

<mosaic_0001>
module attributes {stable_mosaic.version = 11 : i64} {
  func.func @_reward_mlp_kernel(%arg0: i32, %arg1: memref<128x32xf32, #tpu.memory_space<vmem>>, %arg2: memref<128x8xf32, #tpu.memory_space<vmem>>, %arg3: memref<32x256xbf16, #tpu.memory_space<vmem>>, %arg4: memref<8x256xbf16, #tpu.memory_space<vmem>>, %arg5: memref<1x256xf32, #tpu.memory_space<vmem>>, %arg6: memref<256x256xbf16, #tpu.memory_space<vmem>>, %arg7: memref<1x256xf32, #tpu.memory_space<vmem>>, %arg8: memref<256x1xbf16, #tpu.memory_space<vmem>>, %arg9: memref<1x1xf32, #tpu.memory_space<vmem>>, %arg10: memref<1x128xf32, #tpu.memory_space<vmem>>) attributes {dimension_semantics = [#tpu.dimension_semantics<parallel>], iteration_bounds = array<i64: 1>, scalar_prefetch = 0 : i64, scratch_operands = 0 : i64, tpu.core_type = #tpu.core_type<tc>, window_params = [{transform_indices = @transform_0, window_bounds = array<i64: 128, 32>}, {transform_indices = @transform_1, window_bounds = array<i64: 128, 8>}, {pipeline_mode = #tpu.pipeline_mode<synchronous>, transform_indices = @transform_2, window_bounds = array<i64: 32, 256>}, {pipeline_mode = #tpu.pipeline_mode<synchronous>, transform_indices = @transform_3, window_bounds = array<i64: 8, 256>}, {pipeline_mode = #tpu.pipeline_mode<synchronous>, transform_indices = @transform_4, window_bounds = array<i64: 1, 256>}, {pipeline_mode = #tpu.pipeline_mode<synchronous>, transform_indices = @transform_5, window_bounds = array<i64: 256, 256>}, {pipeline_mode = #tpu.pipeline_mode<synchronous>, transform_indices = @transform_6, window_bounds = array<i64: 1, 256>}, {pipeline_mode = #tpu.pipeline_mode<synchronous>, transform_indices = @transform_7, window_bounds = array<i64: 256, 1>}, {pipeline_mode = #tpu.pipeline_mode<synchronous>, transform_indices = @transform_8, window_bounds = array<i64: 1, 1>}, {transform_indices = @transform_9, window_bounds = array<i64: 1, 128>}]} {
    %c0 = arith.constant 0 : index
    %c0_0 = arith.constant 0 : index
    %0 = vector.load %arg1[%c0, %c0_0] : memref<128x32xf32, #tpu.memory_space<vmem>>, vector<128x32xf32>
    %1 = arith.truncf %0 : vector<128x32xf32> to vector<128x32xbf16>
    %c0_1 = arith.constant 0 : index
    %c0_2 = arith.constant 0 : index
    %2 = vector.load %arg2[%c0_1, %c0_2] : memref<128x8xf32, #tpu.memory_space<vmem>>, vector<128x8xf32>
    %3 = arith.truncf %2 : vector<128x8xf32> to vector<128x8xbf16>
    %c0_3 = arith.constant 0 : index
    %c0_4 = arith.constant 0 : index
    %4 = vector.load %arg3[%c0_3, %c0_4] : memref<32x256xbf16, #tpu.memory_space<vmem>>, vector<32x256xbf16>
    %cst = arith.constant dense<0.000000e+00> : vector<128x256xf32>
    %5 = tpu.matmul %1, %4, %cst {dimension_numbers = #tpu.dot_dimension_numbers<[1], [0], [0], [1], [0, 0, 1, 1], [], []>} : vector<128x32xbf16>, vector<32x256xbf16>, vector<128x256xf32> -> vector<128x256xf32>
    %c0_5 = arith.constant 0 : index
    %c0_6 = arith.constant 0 : index
    %6 = vector.load %arg4[%c0_5, %c0_6] : memref<8x256xbf16, #tpu.memory_space<vmem>>, vector<8x256xbf16>
    %cst_7 = arith.constant dense<0.000000e+00> : vector<128x256xf32>
    %7 = tpu.matmul %3, %6, %cst_7 {dimension_numbers = #tpu.dot_dimension_numbers<[1], [0], [0], [1], [0, 0, 1, 1], [], []>} : vector<128x8xbf16>, vector<8x256xbf16>, vector<128x256xf32> -> vector<128x256xf32>
    %8 = arith.addf %5, %7 : vector<128x256xf32>
    %c0_8 = arith.constant 0 : index
    %c0_9 = arith.constant 0 : index
    %9 = vector.load %arg5[%c0_8, %c0_9] : memref<1x256xf32, #tpu.memory_space<vmem>>, vector<1x256xf32>
    %10 = vector.broadcast %9 : vector<1x256xf32> to vector<128x256xf32>
    %11 = arith.addf %8, %10 : vector<128x256xf32>
    %cst_10 = arith.constant 0.000000e+00 : f32
    %12 = vector.broadcast %cst_10 : f32 to vector<128x256xf32>
    %13 = arith.maximumf %11, %12 : vector<128x256xf32>
    %14 = arith.truncf %13 : vector<128x256xf32> to vector<128x256xbf16>
    %c0_11 = arith.constant 0 : index
    %c0_12 = arith.constant 0 : index
    %15 = vector.load %arg6[%c0_11, %c0_12] : memref<256x256xbf16, #tpu.memory_space<vmem>>, vector<256x256xbf16>
    %cst_13 = arith.constant dense<0.000000e+00> : vector<128x256xf32>
    %16 = tpu.matmul %14, %15, %cst_13 {dimension_numbers = #tpu.dot_dimension_numbers<[1], [0], [0], [1], [0, 0, 1, 1], [], []>} : vector<128x256xbf16>, vector<256x256xbf16>, vector<128x256xf32> -> vector<128x256xf32>
    %c0_14 = arith.constant 0 : index
    %c0_15 = arith.constant 0 : index
    %17 = vector.load %arg7[%c0_14, %c0_15] : memref<1x256xf32, #tpu.memory_space<vmem>>, vector<1x256xf32>
    %18 = vector.broadcast %17 : vector<1x256xf32> to vector<128x256xf32>
    %19 = arith.addf %16, %18 : vector<128x256xf32>
    %cst_16 = arith.constant 0.000000e+00 : f32
    %20 = vector.broadcast %cst_16 : f32 to vector<128x256xf32>
    %21 = arith.maximumf %19, %20 : vector<128x256xf32>
    %22 = arith.truncf %21 : vector<128x256xf32> to vector<128x256xbf16>
    %c0_17 = arith.constant 0 : index
    %c0_18 = arith.constant 0 : index
    %23 = vector.load %arg8[%c0_17, %c0_18] : memref<256x1xbf16, #tpu.memory_space<vmem>>, vector<256x1xbf16>
    %cst_19 = arith.constant dense<0.000000e+00> : vector<128x1xf32>
    %24 = tpu.matmul %22, %23, %cst_19 {dimension_numbers = #tpu.dot_dimension_numbers<[1], [0], [0], [1], [0, 0, 1, 1], [], []>} : vector<128x256xbf16>, vector<256x1xbf16>, vector<128x1xf32> -> vector<128x1xf32>
    %25 = tpu.transpose %24, [1, 0] : vector<128x1xf32> -> vector<1x128xf32>
    %c0_20 = arith.constant 0 : index
    %c0_21 = arith.constant 0 : index
    %26 = vector.load %arg9[%c0_20, %c0_21] : memref<1x1xf32, #tpu.memory_space<vmem>>, vector<1x1xf32>
    %27 = vector.broadcast %26 : vector<1x1xf32> to vector<1x128xf32>
    %28 = arith.addf %25, %27 : vector<1x128xf32>
    %c0_22 = arith.constant 0 : index
    %c0_23 = arith.constant 0 : index
    %29 = vector.load %arg10[%c0_22, %c0_23] : memref<1x128xf32, #tpu.memory_space<vmem>>, vector<1x128xf32>
    tpu.vector_store %arg10[%c0_22, %c0_23], %28 {strides = array<i32>} : memref<1x128xf32, #tpu.memory_space<vmem>>, vector<1x128xf32>,
    return
  }
  func.func @transform_0(%arg0: i32) -> (i32, i32) {
    %c0_i32 = arith.constant 0 : i32
    %c0_i32_0 = arith.constant 0 : i32
    return %arg0, %c0_i32 : i32, i32
  }
  func.func @transform_1(%arg0: i32) -> (i32, i32) {
    %c0_i32 = arith.constant 0 : i32
    %c0_i32_0 = arith.constant 0 : i32
    return %arg0, %c0_i32 : i32, i32
  }
  func.func @transform_2(%arg0: i32) -> (i32, i32) {
    %c0_i32 = arith.constant 0 : i32
    %c0_i32_0 = arith.constant 0 : i32
    %c0_i32_1 = arith.constant 0 : i32
    return %c0_i32, %c0_i32_0 : i32, i32
  }
  func.func @transform_3(%arg0: i32) -> (i32, i32) {
    %c0_i32 = arith.constant 0 : i32
    %c0_i32_0 = arith.constant 0 : i32
    %c0_i32_1 = arith.constant 0 : i32
    return %c0_i32, %c0_i32_0 : i32, i32
  }
  func.func @transform_4(%arg0: i32) -> (i32, i32) {
    %c0_i32 = arith.constant 0 : i32
    %c0_i32_0 = arith.constant 0 : i32
    %c0_i32_1 = arith.constant 0 : i32
    return %c0_i32, %c0_i32_0 : i32, i32
  }
  func.func @transform_5(%arg0: i32) -> (i32, i32) {
    %c0_i32 = arith.constant 0 : i32
    %c0_i32_0 = arith.constant 0 : i32
    %c0_i32_1 = arith.constant 0 : i32
    return %c0_i32, %c0_i32_0 : i32, i32
  }
  func.func @transform_6(%arg0: i32) -> (i32, i32) {
    %c0_i32 = arith.constant 0 : i32
    %c0_i32_0 = arith.constant 0 : i32
    %c0_i32_1 = arith.constant 0 : i32
    return %c0_i32, %c0_i32_0 : i32, i32
  }
  func.func @transform_7(%arg0: i32) -> (i32, i32) {
    %c0_i32 = arith.constant 0 : i32
    %c0_i32_0 = arith.constant 0 : i32
    %c0_i32_1 = arith.constant 0 : i32
    return %c0_i32, %c0_i32_0 : i32, i32
  }
  func.func @transform_8(%arg0: i32) -> (i32, i32) {
    %c0_i32 = arith.constant 0 : i32
    %c0_i32_0 = arith.constant 0 : i32
    %c0_i32_1 = arith.constant 0 : i32
    return %c0_i32, %c0_i32_0 : i32, i32
  }
  func.func @transform_9(%arg0: i32) -> (i32, i32) {
    %c0_i32 = arith.constant 0 : i32
    %c0_i32_0 = arith.constant 0 : i32
    return %c0_i32, %arg0 : i32, i32
  }
}

</mosaic_0001>

<llo_original>
// kernel: reward_model_forward.1
$region0: #{reward_model_forward.1}
  #allocation0 [shape = 'u32[]', space=smem, size = 0x4, offset = 0x4, fixed_abs, tag = 'smem constant byte address 0x4 - core index']
  #allocation1 [shape = 'u32[72,128]{1,0:T(1,128)}', space=vmem, size = 0x9000, scoped, tag = 'internal scratch']
  #allocation2 [shape = 'f32[1,1]{1,0:T(1,128)S(1)}', space=vmem, size = 0x200, scoped, tag = 'scoped memory for reward_model_forward.1']
  %s0 = inlined_call_operand.vmem [shape: f32[128,32], index: 0, kind: input, shape index: {}]
  %s1 = inlined_call_operand.vmem [shape: f32[128,8], index: 1, kind: input, shape index: {}]
  %s2 = inlined_call_operand.vmem [shape: bf16[32,256], index: 2, kind: input, shape index: {}]
  %s3 = inlined_call_operand.vmem [shape: bf16[8,256], index: 3, kind: input, shape index: {}]
  %s4 = inlined_call_operand.vmem [shape: f32[1,256], index: 4, kind: input, shape index: {}]
  %s5 = inlined_call_operand.vmem [shape: bf16[256,256], index: 5, kind: input, shape index: {}]
  %s6 = inlined_call_operand.vmem [shape: f32[1,256], index: 6, kind: input, shape index: {}]
  %s7 = inlined_call_operand.vmem [shape: bf16[256,1], index: 7, kind: input, shape index: {}]
  %s8 = inlined_call_operand.<no memory space> [shape: f32[1,1], index: 8, kind: input, shape index: {}]
  %s9 = inlined_call_operand.vmem [shape: f32[1,128], index: 9, kind: output, shape index: {}]
  %s10 = sld [smem:[#allocation0]]
  $region46: #{reward_model_forward.1} parent=0
    _
  %s12 = ssub.s32 1, %s10
  %s13 = scalar_select 0, %s12, %s10
  %v14 = vstv %s8
  %15 = vst [vmem:[#allocation2] sm:$0x1] %v14
  // Predicated region
  $region2: #{reward_model_forward.1} parent=0 // pred_check
    _
  $region3: #{reward_model_forward.1} parent=0 // pred_check_branch
    %17 = sbr.rel (0) target = $region5
  $region4: #{reward_model_forward.1} parent=0 // pred_region
    _
  $region5: #{reward_model_forward.1} parent=0 // pred_fallthru
    _
  // Predicated region
  $region6: #{reward_model_forward.1} parent=0 // pred_check
    _
  $region7: #{reward_model_forward.1} parent=0 // pred_check_branch
    %19 = sbr.rel (0) target = $region9
  $region8: #{reward_model_forward.1} parent=0 // pred_region
    _
  $region9: #{reward_model_forward.1} parent=0 // pred_fallthru
    _
  // Predicated region
  $region10: #{reward_model_forward.1} parent=0 // pred_check
    _
  $region11: #{reward_model_forward.1} parent=0 // pred_check_branch
    %21 = sbr.rel (0) target = $region13
  $region12: #{reward_model_forward.1} parent=0 // pred_region
    _
  $region13: #{reward_model_forward.1} parent=0 // pred_fallthru
    _
  // Predicated region
  $region14: #{reward_model_forward.1} parent=0 // pred_check
    _
  $region15: #{reward_model_forward.1} parent=0 // pred_check_branch
    %23 = sbr.rel (0) target = $region17
  $region16: #{reward_model_forward.1} parent=0 // pred_region
    _
  $region17: #{reward_model_forward.1} parent=0 // pred_fallthru
    _
  // Predicated region
  $region18: #{reward_model_forward.1} parent=0 // pred_check
    _
  $region19: #{reward_model_forward.1} parent=0 // pred_check_branch
    %25 = sbr.rel (0) target = $region21
  $region20: #{reward_model_forward.1} parent=0 // pred_region
    _
  $region21: #{reward_model_forward.1} parent=0 // pred_fallthru
    _
  // Predicated region
  $region22: #{reward_model_forward.1} parent=0 // pred_check
    _
  $region23: #{reward_model_forward.1} parent=0 // pred_check_branch
    %27 = sbr.rel (0) target = $region25
  $region24: #{reward_model_forward.1} parent=0 // pred_region
    _
  $region25: #{reward_model_forward.1} parent=0 // pred_fallthru
    _
  // Predicated region
  $region26: #{reward_model_forward.1} parent=0 // pred_check
    _
  $region27: #{reward_model_forward.1} parent=0 // pred_check_branch
    %29 = sbr.rel (0) target = $region29
  $region28: #{reward_model_forward.1} parent=0 // pred_region
    _
  $region29: #{reward_model_forward.1} parent=0 // pred_fallthru
    _
  // Predicated region
  $region30: #{reward_model_forward.1} parent=0 // pred_check
    _
  $region31: #{reward_model_forward.1} parent=0 // pred_check_branch
    %31 = sbr.rel (0) target = $region33
  $region32: #{reward_model_forward.1} parent=0 // pred_region
    _
  $region33: #{reward_model_forward.1} parent=0 // pred_fallthru
    _
  // Predicated region
  $region34: #{reward_model_forward.1} parent=0 // pred_check
    _
  $region35: #{reward_model_forward.1} parent=0 // pred_check_branch
    %33 = sbr.rel (0) target = $region37
  $region36: #{reward_model_forward.1} parent=0 // pred_region
    _
  $region37: #{reward_model_forward.1} parent=0 // pred_fallthru
    _
  %v35 = vld [vmem:[%s0] sm:$0xff]
  %v36 = vld [vmem:[%s0 + $0x8] sm:$0xff]
  %v37 = vld [vmem:[%s0 + $0x10] sm:$0xff]
  %v38 = vld [vmem:[%s0 + $0x18] sm:$0xff]
  %v39 = vld [vmem:[%s0 + $0x20] sm:$0xff]
  %v40 = vld [vmem:[%s0 + $0x28] sm:$0xff]
  %v41 = vld [vmem:[%s0 + $0x30] sm:$0xff]
  %v42 = vld [vmem:[%s0 + $0x38] sm:$0xff]
  %v43 = vld [vmem:[%s0 + $0x40] sm:$0xff]
  %v44 = vld [vmem:[%s0 + $0x48] sm:$0xff]
  %v45 = vld [vmem:[%s0 + $0x50] sm:$0xff]
  %v46 = vld [vmem:[%s0 + $0x58] sm:$0xff]
  %v47 = vld [vmem:[%s0 + $0x60] sm:$0xff]
  %v48 = vld [vmem:[%s0 + $0x68] sm:$0xff]
  %v49 = vld [vmem:[%s0 + $0x70] sm:$0xff]
  %v50 = vld [vmem:[%s0 + $0x78] sm:$0xff]
  %v51 = vpack.c.bf16 %v36, %v35
  %v52 = vpack.c.bf16 %v38, %v37
  %v53 = vpack.c.bf16 %v40, %v39
  %v54 = vpack.c.bf16 %v42, %v41
  %v55 = vpack.c.bf16 %v44, %v43
  %v56 = vpack.c.bf16 %v46, %v45
  %v57 = vpack.c.bf16 %v48, %v47
  %v58 = vpack.c.bf16 %v50, %v49
  %v59 = vld [vmem:[%s1] sm:$0xff]
  %v60 = vld [vmem:[%s1 + $0x8] sm:$0xff]
  %v61 = vld [vmem:[%s1 + $0x10] sm:$0xff]
  %v62 = vld [vmem:[%s1 + $0x18] sm:$0xff]
  %v63 = vld [vmem:[%s1 + $0x20] sm:$0xff]
  %v64 = vld [vmem:[%s1 + $0x28] sm:$0xff]
  %v65 = vld [vmem:[%s1 + $0x30] sm:$0xff]
  %v66 = vld [vmem:[%s1 + $0x38] sm:$0xff]
  %v67 = vld [vmem:[%s1 + $0x40] sm:$0xff]
  %v68 = vld [vmem:[%s1 + $0x48] sm:$0xff]
  %v69 = vld [vmem:[%s1 + $0x50] sm:$0xff]
  %v70 = vld [vmem:[%s1 + $0x58] sm:$0xff]
  %v71 = vld [vmem:[%s1 + $0x60] sm:$0xff]
  %v72 = vld [vmem:[%s1 + $0x68] sm:$0xff]
  %v73 = vld [vmem:[%s1 + $0x70] sm:$0xff]
  %v74 = vld [vmem:[%s1 + $0x78] sm:$0xff]
  %v75 = vpack.c.bf16 %v60, %v59
  %v76 = vpack.c.bf16 %v62, %v61
  %v77 = vpack.c.bf16 %v64, %v63
  %v78 = vpack.c.bf16 %v66, %v65
  %v79 = vpack.c.bf16 %v68, %v67
  %v80 = vpack.c.bf16 %v70, %v69
  %v81 = vpack.c.bf16 %v72, %v71
  %v82 = vpack.c.bf16 %v74, %v73
  %v83 = vld [vmem:[%s2] sm:$0xff]
  %v84 = vld [vmem:[%s2 + $0x8] sm:$0xff]
  %v85 = vld [vmem:[%s2 + $0x10] sm:$0xff]
  %v86 = vld [vmem:[%s2 + $0x18] sm:$0xff]
  %v87 = vld [vmem:[%s3] sm:$0xff]
  %v89 = vunpack.c.l.b16 %v87
  %v90 = vunpack.c.h.b16 %v87
  %v91 = vpack.c.b16 %v89, %v89
  %v92 = vpack.c.b16 %v90, %v90
  %vm93 = vcmask 64512
  %v95 = vsel %vm93, %v75, 0
  %v98 = vsel %vm93, %v76, 0
  %v101 = vsel %vm93, %v77, 0
  %v104 = vsel %vm93, %v78, 0
  %v107 = vsel %vm93, %v79, 0
  %v110 = vsel %vm93, %v80, 0
  %v113 = vsel %vm93, %v81, 0
  %v116 = vsel %vm93, %v82, 0
  %vm118 = vcmask 1043456
  %v120 = vsel %vm118, %v91, 0
  %v123 = vsel %vm118, %v92, 0
  %125 = vmatpush.bf16.msra.mxu0 0
  %126 = vmatpush.bf16.msra.mxu0 0
  %127 = vmatpush.bf16.msra.mxu0 0
  %128 = vmatpush.bf16.msra.mxu0 0
  %129 = vmatpush.bf16.msra.mxu0 0
  %130 = vmatpush.bf16.msra.mxu0 0
  %131 = vmatpush.bf16.msra.mxu0 0
  %132 = vmatpush.bf16.msra.mxu0 %v120
  %133 = vmatmul.bf16.gmra.mxu0 %v95
  %v134 = vpop.f32.mrf.mxu0
  %v135 = vadd.f32 0.0, %v134
  %v136 = vpop.f32.mrf.mxu0
  %v137 = vadd.f32 0.0, %v136
  %138 = vmatmul.bf16.gmra.mxu0 %v98
  %v139 = vpop.f32.mrf.mxu0
  %v140 = vadd.f32 0.0, %v139
  %v141 = vpop.f32.mrf.mxu0
  %v142 = vadd.f32 0.0, %v141
  %143 = vmatmul.bf16.gmra.mxu0 %v101
  %v144 = vpop.f32.mrf.mxu0
  %v145 = vadd.f32 0.0, %v144
  %v146 = vpop.f32.mrf.mxu0
  %v147 = vadd.f32 0.0, %v146
  %148 = vmatmul.bf16.gmra.mxu0 %v104
  %v149 = vpop.f32.mrf.mxu0
  %v150 = vadd.f32 0.0, %v149
  %v151 = vpop.f32.mrf.mxu0
  %v152 = vadd.f32 0.0, %v151
  %153 = vmatmul.bf16.gmra.mxu0 %v107
  %v154 = vpop.f32.mrf.mxu0
  %v155 = vadd.f32 0.0, %v154
  %v156 = vpop.f32.mrf.mxu0
  %v157 = vadd.f32 0.0, %v156
  %158 = vmatmul.bf16.gmra.mxu0 %v110
  %v159 = vpop.f32.mrf.mxu0
  %v160 = vadd.f32 0.0, %v159
  %v161 = vpop.f32.mrf.mxu0
  %v162 = vadd.f32 0.0, %v161
  %163 = vmatmul.bf16.gmra.mxu0 %v113
  %v164 = vpop.f32.mrf.mxu0
  %v165 = vadd.f32 0.0, %v164
  %v166 = vpop.f32.mrf.mxu0
  %v167 = vadd.f32 0.0, %v166
  %168 = vmatmul.bf16.gmra.mxu0 %v116
  %v169 = vpop.f32.mrf.mxu0
  %v170 = vadd.f32 0.0, %v169
  %v171 = vpop.f32.mrf.mxu0
  %v172 = vadd.f32 0.0, %v171
  %173 = vdwg.mxu0
  %174 = vmatpush.bf16.msra.mxu0 0
  %175 = vmatpush.bf16.msra.mxu0 0
  %176 = vmatpush.bf16.msra.mxu0 0
  %177 = vmatpush.bf16.msra.mxu0 0
  %178 = vmatpush.bf16.msra.mxu0 0
  %179 = vmatpush.bf16.msra.mxu0 0
  %180 = vmatpush.bf16.msra.mxu0 0
  %181 = vmatpush.bf16.msra.mxu0 %v123
  %182 = vmatmul.bf16.gmra.mxu0 %v95
  %v183 = vpop.f32.mrf.mxu0
  %v184 = vadd.f32 0.0, %v183
  %v185 = vpop.f32.mrf.mxu0
  %v186 = vadd.f32 0.0, %v185
  %187 = vmatmul.bf16.gmra.mxu0 %v98
  %v188 = vpop.f32.mrf.mxu0
  %v189 = vadd.f32 0.0, %v188
  %v190 = vpop.f32.mrf.mxu0
  %v191 = vadd.f32 0.0, %v190
  %192 = vmatmul.bf16.gmra.mxu0 %v101
  %v193 = vpop.f32.mrf.mxu0
  %v194 = vadd.f32 0.0, %v193
  %v195 = vpop.f32.mrf.mxu0
  %v196 = vadd.f32 0.0, %v195
  %197 = vmatmul.bf16.gmra.mxu0 %v104
  %v198 = vpop.f32.mrf.mxu0
  %v199 = vadd.f32 0.0, %v198
  %v200 = vpop.f32.mrf.mxu0
  %v201 = vadd.f32 0.0, %v200
  %202 = vmatmul.bf16.gmra.mxu0 %v107
  %v203 = vpop.f32.mrf.mxu0
  %v204 = vadd.f32 0.0, %v203
  %v205 = vpop.f32.mrf.mxu0
  %v206 = vadd.f32 0.0, %v205
  %207 = vmatmul.bf16.gmra.mxu0 %v110
  %v208 = vpop.f32.mrf.mxu0
  %v209 = vadd.f32 0.0, %v208
  %v210 = vpop.f32.mrf.mxu0
  %v211 = vadd.f32 0.0, %v210
  %212 = vmatmul.bf16.gmra.mxu0 %v113
  %v213 = vpop.f32.mrf.mxu0
  %v214 = vadd.f32 0.0, %v213
  %v215 = vpop.f32.mrf.mxu0
  %v216 = vadd.f32 0.0, %v215
  %217 = vmatmul.bf16.gmra.mxu0 %v116
  %v218 = vpop.f32.mrf.mxu0
  %v219 = vadd.f32 0.0, %v218
  %v220 = vpop.f32.mrf.mxu0
  %v221 = vadd.f32 0.0, %v220
  %222 = vdwg.mxu0
  %v227 = vunpack.c.l.b16 %v83
  %v228 = vunpack.c.h.b16 %v83
  %v229 = vunpack.c.l.b16 %v84
  %v230 = vunpack.c.h.b16 %v84
  %v231 = vunpack.c.l.b16 %v85
  %v232 = vunpack.c.h.b16 %v85
  %v233 = vunpack.c.l.b16 %v86
  %v234 = vunpack.c.h.b16 %v86
  %v235 = vpack.c.b16 %v229, %v227
  %v236 = vpack.c.b16 %v230, %v228
  %v237 = vpack.c.b16 %v233, %v231
  %v238 = vpack.c.b16 %v234, %v232
  %vm243 = vcmask 261120
  %v245 = vsel %vm243, %v51, 0
  %v248 = vsel %vm243, %v52, 0
  %v251 = vsel %vm243, %v53, 0
  %v254 = vsel %vm243, %v54, 0
  %v257 = vsel %vm243, %v55, 0
  %v260 = vsel %vm243, %v56, 0
  %v263 = vsel %vm243, %v57, 0
  %v266 = vsel %vm243, %v58, 0
  %268 = vmatpush.bf16.msra.mxu0 0
  %269 = vmatpush.bf16.msra.mxu0 0
  %270 = vmatpush.bf16.msra.mxu0 0
  %271 = vmatpush.bf16.msra.mxu0 0
  %272 = vmatpush.bf16.msra.mxu0 0
  %273 = vmatpush.bf16.msra.mxu0 0
  %274 = vmatpush.bf16.msra.mxu0 %v237
  %275 = vmatpush.bf16.msra.mxu0 %v235
  %276 = vmatmul.bf16.gmra.mxu0 %v245
  %v277 = vpop.f32.mrf.mxu0
  %v278 = vadd.f32 %v135, %v277
  %v279 = vpop.f32.mrf.mxu0
  %v280 = vadd.f32 %v137, %v279
  %281 = vmatmul.bf16.gmra.mxu0 %v248
  %v282 = vpop.f32.mrf.mxu0
  %v283 = vadd.f32 %v140, %v282
  %v284 = vpop.f32.mrf.mxu0
  %v285 = vadd.f32 %v142, %v284
  %286 = vmatmul.bf16.gmra.mxu0 %v251
  %v287 = vpop.f32.mrf.mxu0
  %v288 = vadd.f32 %v145, %v287
  %v289 = vpop.f32.mrf.mxu0
  %v290 = vadd.f32 %v147, %v289
  %291 = vmatmul.bf16.gmra.mxu0 %v254
  %v292 = vpop.f32.mrf.mxu0
  %v293 = vadd.f32 %v150, %v292
  %v294 = vpop.f32.mrf.mxu0
  %v295 = vadd.f32 %v152, %v294
  %296 = vmatmul.bf16.gmra.mxu0 %v257
  %v297 = vpop.f32.mrf.mxu0
  %v298 = vadd.f32 %v155, %v297
  %v299 = vpop.f32.mrf.mxu0
  %v300 = vadd.f32 %v157, %v299
  %301 = vmatmul.bf16.gmra.mxu0 %v260
  %v302 = vpop.f32.mrf.mxu0
  %v303 = vadd.f32 %v160, %v302
  %v304 = vpop.f32.mrf.mxu0
  %v305 = vadd.f32 %v162, %v304
  %306 = vmatmul.bf16.gmra.mxu0 %v263
  %v307 = vpop.f32.mrf.mxu0
  %v308 = vadd.f32 %v165, %v307
  %v309 = vpop.f32.mrf.mxu0
  %v310 = vadd.f32 %v167, %v309
  %311 = vmatmul.bf16.gmra.mxu0 %v266
  %v312 = vpop.f32.mrf.mxu0
  %v313 = vadd.f32 %v170, %v312
  %v314 = vpop.f32.mrf.mxu0
  %v315 = vadd.f32 %v172, %v314
  %316 = vdwg.mxu0
  %317 = vmatpush.bf16.msra.mxu0 0
  %318 = vmatpush.bf16.msra.mxu0 0
  %319 = vmatpush.bf16.msra.mxu0 0
  %320 = vmatpush.bf16.msra.mxu0 0
  %321 = vmatpush.bf16.msra.mxu0 0
  %322 = vmatpush.bf16.msra.mxu0 0
  %323 = vmatpush.bf16.msra.mxu0 %v238
  %324 = vmatpush.bf16.msra.mxu0 %v236
  %325 = vmatmul.bf16.gmra.mxu0 %v245
  %v326 = vpop.f32.mrf.mxu0
  %v327 = vadd.f32 %v184, %v326
  %v328 = vpop.f32.mrf.mxu0
  %v329 = vadd.f32 %v186, %v328
  %330 = vmatmul.bf16.gmra.mxu0 %v248
  %v331 = vpop.f32.mrf.mxu0
  %v332 = vadd.f32 %v189, %v331
  %v333 = vpop.f32.mrf.mxu0
  %v334 = vadd.f32 %v191, %v333
  %335 = vmatmul.bf16.gmra.mxu0 %v251
  %v336 = vpop.f32.mrf.mxu0
  %v337 = vadd.f32 %v194, %v336
  %v338 = vpop.f32.mrf.mxu0
  %v339 = vadd.f32 %v196, %v338
  %340 = vmatmul.bf16.gmra.mxu0 %v254
  %v341 = vpop.f32.mrf.mxu0
  %v342 = vadd.f32 %v199, %v341
  %v343 = vpop.f32.mrf.mxu0
  %v344 = vadd.f32 %v201, %v343
  %345 = vmatmul.bf16.gmra.mxu0 %v257
  %v346 = vpop.f32.mrf.mxu0
  %v347 = vadd.f32 %v204, %v346
  %v348 = vpop.f32.mrf.mxu0
  %v349 = vadd.f32 %v206, %v348
  %350 = vmatmul.bf16.gmra.mxu0 %v260
  %v351 = vpop.f32.mrf.mxu0
  %v352 = vadd.f32 %v209, %v351
  %v353 = vpop.f32.mrf.mxu0
  %v354 = vadd.f32 %v211, %v353
  %355 = vmatmul.bf16.gmra.mxu0 %v263
  %v356 = vpop.f32.mrf.mxu0
  %v357 = vadd.f32 %v214, %v356
  %v358 = vpop.f32.mrf.mxu0
  %v359 = vadd.f32 %v216, %v358
  %360 = vmatmul.bf16.gmra.mxu0 %v266
  %v361 = vpop.f32.mrf.mxu0
  %v362 = vadd.f32 %v219, %v361
  %v363 = vpop.f32.mrf.mxu0
  %v364 = vadd.f32 %v221, %v363
  %365 = vdwg.mxu0
  %v366 = vld [vmem:[%s4] sm:$0x3]
  %v368 = vperm.slane %v366, 0
  %v369 = vperm.slane %v366, 1
  %v372 = vadd.f32 %v278, %v368
  %v373 = vadd.f32 %v327, %v369
  %v374 = vadd.f32 %v280, %v368
  %v375 = vadd.f32 %v329, %v369
  %v376 = vadd.f32 %v283, %v368
  %v377 = vadd.f32 %v332, %v369
  %v378 = vadd.f32 %v285, %v368
  %v379 = vadd.f32 %v334, %v369
  %v380 = vadd.f32 %v288, %v368
  %v381 = vadd.f32 %v337, %v369
  %v382 = vadd.f32 %v290, %v368
  %v383 = vadd.f32 %v339, %v369
  %v384 = vadd.f32 %v293, %v368
  %v385 = vadd.f32 %v342, %v369
  %v386 = vadd.f32 %v295, %v368
  %v387 = vadd.f32 %v344, %v369
  %v388 = vadd.f32 %v298, %v368
  %v389 = vadd.f32 %v347, %v369
  %v390 = vadd.f32 %v300, %v368
  %v391 = vadd.f32 %v349, %v369
  %v392 = vadd.f32 %v303, %v368
  %v393 = vadd.f32 %v352, %v369
  %v394 = vadd.f32 %v305, %v368
  %v395 = vadd.f32 %v354, %v369
  %v396 = vadd.f32 %v308, %v368
  %v397 = vadd.f32 %v357, %v369
  %v398 = vadd.f32 %v310, %v368
  %v399 = vadd.f32 %v359, %v369
  %v400 = vadd.f32 %v313, %v368
  %v401 = vadd.f32 %v362, %v369
  %v402 = vadd.f32 %v315, %v368
  %v403 = vadd.f32 %v364, %v369
  %v404 = vmax.f32 %v372, 0.0
  %v405 = vmax.f32 %v373, 0.0
  %v406 = vmax.f32 %v374, 0.0
  %v407 = vmax.f32 %v375, 0.0
  %v408 = vmax.f32 %v376, 0.0
  %v409 = vmax.f32 %v377, 0.0
  %v410 = vmax.f32 %v378, 0.0
  %v411 = vmax.f32 %v379, 0.0
  %v412 = vmax.f32 %v380, 0.0
  %v413 = vmax.f32 %v381, 0.0
  %v414 = vmax.f32 %v382, 0.0
  %v415 = vmax.f32 %v383, 0.0
  %v416 = vmax.f32 %v384, 0.0
  %v417 = vmax.f32 %v385, 0.0
  %v418 = vmax.f32 %v386, 0.0
  %v419 = vmax.f32 %v387, 0.0
  %v420 = vmax.f32 %v388, 0.0
  %v421 = vmax.f32 %v389, 0.0
  %v422 = vmax.f32 %v390, 0.0
  %v423 = vmax.f32 %v391, 0.0
  %v424 = vmax.f32 %v392, 0.0
  %v425 = vmax.f32 %v393, 0.0
  %v426 = vmax.f32 %v394, 0.0
  %v427 = vmax.f32 %v395, 0.0
  %v428 = vmax.f32 %v396, 0.0
  %v429 = vmax.f32 %v397, 0.0
  %v430 = vmax.f32 %v398, 0.0
  %v431 = vmax.f32 %v399, 0.0
  %v432 = vmax.f32 %v400, 0.0
  %v433 = vmax.f32 %v401, 0.0
  %v434 = vmax.f32 %v402, 0.0
  %v435 = vmax.f32 %v403, 0.0
  %v436 = vpack.c.bf16 %v406, %v404
  %v437 = vpack.c.bf16 %v407, %v405
  %v438 = vpack.c.bf16 %v410, %v408
  %v439 = vpack.c.bf16 %v411, %v409
  %v440 = vpack.c.bf16 %v414, %v412
  %v441 = vpack.c.bf16 %v415, %v413
  %v442 = vpack.c.bf16 %v418, %v416
  %v443 = vpack.c.bf16 %v419, %v417
  %v444 = vpack.c.bf16 %v422, %v420
  %v445 = vpack.c.bf16 %v423, %v421
  %v446 = vpack.c.bf16 %v426, %v424
  %v447 = vpack.c.bf16 %v427, %v425
  %v448 = vpack.c.bf16 %v430, %v428
  %v449 = vpack.c.bf16 %v431, %v429
  %v450 = vpack.c.bf16 %v434, %v432
  %v451 = vpack.c.bf16 %v435, %v433
  %v452 = vld [vmem:[%s5] sm:$0xff]
  %v453 = vld [vmem:[%s5 + $0x8] sm:$0xff]
  %v454 = vld [vmem:[%s5 + $0x10] sm:$0xff]
  %v455 = vld [vmem:[%s5 + $0x18] sm:$0xff]
  %v456 = vld [vmem:[%s5 + $0x20] sm:$0xff]
  %v457 = vld [vmem:[%s5 + $0x28] sm:$0xff]
  %v458 = vld [vmem:[%s5 + $0x30] sm:$0xff]
  %v459 = vld [vmem:[%s5 + $0x38] sm:$0xff]
  %v460 = vld [vmem:[%s5 + $0x40] sm:$0xff]
  %v461 = vld [vmem:[%s5 + $0x48] sm:$0xff]
  %v462 = vld [vmem:[%s5 + $0x50] sm:$0xff]
  %v463 = vld [vmem:[%s5 + $0x58] sm:$0xff]
  %v464 = vld [vmem:[%s5 + $0x60] sm:$0xff]
  %v465 = vld [vmem:[%s5 + $0x68] sm:$0xff]
  %v466 = vld [vmem:[%s5 + $0x70] sm:$0xff]
  %v467 = vld [vmem:[%s5 + $0x78] sm:$0xff]
  %v468 = vld [vmem:[%s5 + $0x80] sm:$0xff]
  %v469 = vld [vmem:[%s5 + $0x88] sm:$0xff]
  %v470 = vld [vmem:[%s5 + $0x90] sm:$0xff]
  %v471 = vld [vmem:[%s5 + $0x98] sm:$0xff]
  %v472 = vld [vmem:[%s5 + $0xa0] sm:$0xff]
  %v473 = vld [vmem:[%s5 + $0xa8] sm:$0xff]
  %v474 = vld [vmem:[%s5 + $0xb0] sm:$0xff]
  %v475 = vld [vmem:[%s5 + $0xb8] sm:$0xff]
  %v476 = vld [vmem:[%s5 + $0xc0] sm:$0xff]
  %v477 = vld [vmem:[%s5 + $0xc8] sm:$0xff]
  %v478 = vld [vmem:[%s5 + $0xd0] sm:$0xff]
  %v479 = vld [vmem:[%s5 + $0xd8] sm:$0xff]
  %v480 = vld [vmem:[%s5 + $0xe0] sm:$0xff]
  %v481 = vld [vmem:[%s5 + $0xe8] sm:$0xff]
  %v482 = vld [vmem:[%s5 + $0xf0] sm:$0xff]
  %v483 = vld [vmem:[%s5 + $0xf8] sm:$0xff]
  %v484 = vld [vmem:[%s6] sm:$0x3]
  %v486 = vperm.slane %v484, 0
  %v487 = vperm.slane %v484, 1
  %v522 = vunpack.c.l.b16 %v452
  %v523 = vunpack.c.h.b16 %v452
  %v524 = vunpack.c.l.b16 %v453
  %v525 = vunpack.c.h.b16 %v453
  %v526 = vunpack.c.l.b16 %v454
  %v527 = vunpack.c.h.b16 %v454
  %v528 = vunpack.c.l.b16 %v455
  %v529 = vunpack.c.h.b16 %v455
  %v530 = vunpack.c.l.b16 %v456
  %v531 = vunpack.c.h.b16 %v456
  %v532 = vunpack.c.l.b16 %v457
  %v533 = vunpack.c.h.b16 %v457
  %v534 = vunpack.c.l.b16 %v458
  %v535 = vunpack.c.h.b16 %v458
  %v536 = vunpack.c.l.b16 %v459
  %v537 = vunpack.c.h.b16 %v459
  %v538 = vunpack.c.l.b16 %v460
  %v539 = vunpack.c.h.b16 %v460
  %v540 = vunpack.c.l.b16 %v461
  %v541 = vunpack.c.h.b16 %v461
  %v542 = vunpack.c.l.b16 %v462
  %v543 = vunpack.c.h.b16 %v462
  %v544 = vunpack.c.l.b16 %v463
  %v545 = vunpack.c.h.b16 %v463
  %v546 = vunpack.c.l.b16 %v464
  %v547 = vunpack.c.h.b16 %v464
  %v548 = vunpack.c.l.b16 %v465
  %v549 = vunpack.c.h.b16 %v465
  %v550 = vunpack.c.l.b16 %v466
  %v551 = vunpack.c.h.b16 %v466
  %v552 = vunpack.c.l.b16 %v467
  %v553 = vunpack.c.h.b16 %v467
  %v554 = vunpack.c.l.b16 %v468
  %v555 = vunpack.c.h.b16 %v468
  %v556 = vunpack.c.l.b16 %v469
  %v557 = vunpack.c.h.b16 %v469
  %v558 = vunpack.c.l.b16 %v470
  %v559 = vunpack.c.h.b16 %v470
  %v560 = vunpack.c.l.b16 %v471
  %v561 = vunpack.c.h.b16 %v471
  %v562 = vunpack.c.l.b16 %v472
  %v563 = vunpack.c.h.b16 %v472
  %v564 = vunpack.c.l.b16 %v473
  %v565 = vunpack.c.h.b16 %v473
  %v566 = vunpack.c.l.b16 %v474
  %v567 = vunpack.c.h.b16 %v474
  %v568 = vunpack.c.l.b16 %v475
  %v569 = vunpack.c.h.b16 %v475
  %v570 = vunpack.c.l.b16 %v476
  %v571 = vunpack.c.h.b16 %v476
  %v572 = vunpack.c.l.b16 %v477
  %v573 = vunpack.c.h.b16 %v477
  %v574 = vunpack.c.l.b16 %v478
  %v575 = vunpack.c.h.b16 %v478
  %v576 = vunpack.c.l.b16 %v479
  %v577 = vunpack.c.h.b16 %v479
  %v578 = vunpack.c.l.b16 %v480
  %v579 = vunpack.c.h.b16 %v480
  %v580 = vunpack.c.l.b16 %v481
  %v581 = vunpack.c.h.b16 %v481
  %v582 = vunpack.c.l.b16 %v482
  %v583 = vunpack.c.h.b16 %v482
  %v584 = vunpack.c.l.b16 %v483
  %v585 = vunpack.c.h.b16 %v483
  %v586 = vpack.c.b16 %v524, %v522
  %v587 = vpack.c.b16 %v525, %v523
  %v588 = vpack.c.b16 %v528, %v526
  %v589 = vpack.c.b16 %v529, %v527
  %v590 = vpack.c.b16 %v532, %v530
  %v591 = vpack.c.b16 %v533, %v531
  %v592 = vpack.c.b16 %v536, %v534
  %v593 = vpack.c.b16 %v537, %v535
  %v594 = vpack.c.b16 %v540, %v538
  %v595 = vpack.c.b16 %v541, %v539
  %v596 = vpack.c.b16 %v544, %v542
  %v597 = vpack.c.b16 %v545, %v543
  %v598 = vpack.c.b16 %v548, %v546
  %v599 = vpack.c.b16 %v549, %v547
  %v600 = vpack.c.b16 %v552, %v550
  %v601 = vpack.c.b16 %v553, %v551
  %v602 = vpack.c.b16 %v556, %v554
  %v603 = vpack.c.b16 %v557, %v555
  %v604 = vpack.c.b16 %v560, %v558
  %v605 = vpack.c.b16 %v561, %v559
  %v606 = vpack.c.b16 %v564, %v562
  %v607 = vpack.c.b16 %v565, %v563
  %v608 = vpack.c.b16 %v568, %v566
  %v609 = vpack.c.b16 %v569, %v567
  %v610 = vpack.c.b16 %v572, %v570
  %v611 = vpack.c.b16 %v573, %v571
  %v612 = vpack.c.b16 %v576, %v574
  %v613 = vpack.c.b16 %v577, %v575
  %v614 = vpack.c.b16 %v580, %v578
  %v615 = vpack.c.b16 %v581, %v579
  %v616 = vpack.c.b16 %v584, %v582
  %v617 = vpack.c.b16 %v585, %v583
  %650 = vmatpush.bf16.msra.mxu0 %v600
  %651 = vmatpush.bf16.msra.mxu0 %v598
  %652 = vmatpush.bf16.msra.mxu0 %v596
  %653 = vmatpush.bf16.msra.mxu0 %v594
  %654 = vmatpush.bf16.msra.mxu0 %v592
  %655 = vmatpush.bf16.msra.mxu0 %v590
  %656 = vmatpush.bf16.msra.mxu0 %v588
  %657 = vmatpush.bf16.msra.mxu0 %v586
  %658 = vmatmul.bf16.gmra.mxu0 %v436
  %v659 = vpop.f32.mrf.mxu0
  %v660 = vadd.f32 %v486, %v659
  %v661 = vpop.f32.mrf.mxu0
  %v662 = vadd.f32 %v486, %v661
  %663 = vmatmul.bf16.gmra.mxu0 %v438
  %v664 = vpop.f32.mrf.mxu0
  %v665 = vadd.f32 %v486, %v664
  %v666 = vpop.f32.mrf.mxu0
  %v667 = vadd.f32 %v486, %v666
  %668 = vmatmul.bf16.gmra.mxu0 %v440
  %v669 = vpop.f32.mrf.mxu0
  %v670 = vadd.f32 %v486, %v669
  %v671 = vpop.f32.mrf.mxu0
  %v672 = vadd.f32 %v486, %v671
  %673 = vmatmul.bf16.gmra.mxu0 %v442
  %v674 = vpop.f32.mrf.mxu0
  %v675 = vadd.f32 %v486, %v674
  %v676 = vpop.f32.mrf.mxu0
  %v677 = vadd.f32 %v486, %v676
  %678 = vmatmul.bf16.gmra.mxu0 %v444
  %v679 = vpop.f32.mrf.mxu0
  %v680 = vadd.f32 %v486, %v679
  %v681 = vpop.f32.mrf.mxu0
  %v682 = vadd.f32 %v486, %v681
  %683 = vmatmul.bf16.gmra.mxu0 %v446
  %v684 = vpop.f32.mrf.mxu0
  %v685 = vadd.f32 %v486, %v684
  %v686 = vpop.f32.mrf.mxu0
  %v687 = vadd.f32 %v486, %v686
  %688 = vmatmul.bf16.gmra.mxu0 %v448
  %v689 = vpop.f32.mrf.mxu0
  %v690 = vadd.f32 %v486, %v689
  %v691 = vpop.f32.mrf.mxu0
  %v692 = vadd.f32 %v486, %v691
  %693 = vmatmul.bf16.gmra.mxu0 %v450
  %v694 = vpop.f32.mrf.mxu0
  %v695 = vadd.f32 %v486, %v694
  %v696 = vpop.f32.mrf.mxu0
  %v697 = vadd.f32 %v486, %v696
  %698 = vdwg.mxu0
  %699 = vmatpush.bf16.msra.mxu0 %v616
  %700 = vmatpush.bf16.msra.mxu0 %v614
  %701 = vmatpush.bf16.msra.mxu0 %v612
  %702 = vmatpush.bf16.msra.mxu0 %v610
  %703 = vmatpush.bf16.msra.mxu0 %v608
  %704 = vmatpush.bf16.msra.mxu0 %v606
  %705 = vmatpush.bf16.msra.mxu0 %v604
  %706 = vmatpush.bf16.msra.mxu0 %v602
  %707 = vmatmul.bf16.gmra.mxu0 %v437
  %v708 = vpop.f32.mrf.mxu0
  %v709 = vadd.f32 %v660, %v708
  %v710 = vpop.f32.mrf.mxu0
  %v711 = vadd.f32 %v662, %v710
  %712 = vmatmul.bf16.gmra.mxu0 %v439
  %v713 = vpop.f32.mrf.mxu0
  %v714 = vadd.f32 %v665, %v713
  %v715 = vpop.f32.mrf.mxu0
  %v716 = vadd.f32 %v667, %v715
  %717 = vmatmul.bf16.gmra.mxu0 %v441
  %v718 = vpop.f32.mrf.mxu0
  %v719 = vadd.f32 %v670, %v718
  %v720 = vpop.f32.mrf.mxu0
  %v721 = vadd.f32 %v672, %v720
  %722 = vmatmul.bf16.gmra.mxu0 %v443
  %v723 = vpop.f32.mrf.mxu0
  %v724 = vadd.f32 %v675, %v723
  %v725 = vpop.f32.mrf.mxu0
  %v726 = vadd.f32 %v677, %v725
  %727 = vmatmul.bf16.gmra.mxu0 %v445
  %v728 = vpop.f32.mrf.mxu0
  %v729 = vadd.f32 %v680, %v728
  %v730 = vpop.f32.mrf.mxu0
  %v731 = vadd.f32 %v682, %v730
  %732 = vmatmul.bf16.gmra.mxu0 %v447
  %v733 = vpop.f32.mrf.mxu0
  %v734 = vadd.f32 %v685, %v733
  %v735 = vpop.f32.mrf.mxu0
  %v736 = vadd.f32 %v687, %v735
  %737 = vmatmul.bf16.gmra.mxu0 %v449
  %v738 = vpop.f32.mrf.mxu0
  %v739 = vadd.f32 %v690, %v738
  %v740 = vpop.f32.mrf.mxu0
  %v741 = vadd.f32 %v692, %v740
  %742 = vmatmul.bf16.gmra.mxu0 %v451
  %v743 = vpop.f32.mrf.mxu0
  %v744 = vadd.f32 %v695, %v743
  %v745 = vpop.f32.mrf.mxu0
  %v746 = vadd.f32 %v697, %v745
  %747 = vdwg.mxu0
  %748 = vmatpush.bf16.msra.mxu0 %v601
  %749 = vmatpush.bf16.msra.mxu0 %v599
  %750 = vmatpush.bf16.msra.mxu0 %v597
  %751 = vmatpush.bf16.msra.mxu0 %v595
  %752 = vmatpush.bf16.msra.mxu0 %v593
  %753 = vmatpush.bf16.msra.mxu0 %v591
  %754 = vmatpush.bf16.msra.mxu0 %v589
  %755 = vmatpush.bf16.msra.mxu0 %v587
  %756 = vmatmul.bf16.gmra.mxu0 %v436
  %v757 = vpop.f32.mrf.mxu0
  %v758 = vadd.f32 %v487, %v757
  %v759 = vpop.f32.mrf.mxu0
  %v760 = vadd.f32 %v487, %v759
  %761 = vmatmul.bf16.gmra.mxu0 %v438
  %v762 = vpop.f32.mrf.mxu0
  %v763 = vadd.f32 %v487, %v762
  %v764 = vpop.f32.mrf.mxu0
  %v765 = vadd.f32 %v487, %v764
  %766 = vmatmul.bf16.gmra.mxu0 %v440
  %v767 = vpop.f32.mrf.mxu0
  %v768 = vadd.f32 %v487, %v767
  %v769 = vpop.f32.mrf.mxu0
  %v770 = vadd.f32 %v487, %v769
  %771 = vmatmul.bf16.gmra.mxu0 %v442
  %v772 = vpop.f32.mrf.mxu0
  %v773 = vadd.f32 %v487, %v772
  %v774 = vpop.f32.mrf.mxu0
  %v775 = vadd.f32 %v487, %v774
  %776 = vmatmul.bf16.gmra.mxu0 %v444
  %v777 = vpop.f32.mrf.mxu0
  %v778 = vadd.f32 %v487, %v777
  %v779 = vpop.f32.mrf.mxu0
  %v780 = vadd.f32 %v487, %v779
  %781 = vmatmul.bf16.gmra.mxu0 %v446
  %v782 = vpop.f32.mrf.mxu0
  %v783 = vadd.f32 %v487, %v782
  %v784 = vpop.f32.mrf.mxu0
  %v785 = vadd.f32 %v487, %v784
  %786 = vmatmul.bf16.gmra.mxu0 %v448
  %v787 = vpop.f32.mrf.mxu0
  %v788 = vadd.f32 %v487, %v787
  %v789 = vpop.f32.mrf.mxu0
  %v790 = vadd.f32 %v487, %v789
  %791 = vmatmul.bf16.gmra.mxu0 %v450
  %v792 = vpop.f32.mrf.mxu0
  %v793 = vadd.f32 %v487, %v792
  %v794 = vpop.f32.mrf.mxu0
  %v795 = vadd.f32 %v487, %v794
  %796 = vdwg.mxu0
  %797 = vmatpush.bf16.msra.mxu0 %v617
  %798 = vmatpush.bf16.msra.mxu0 %v615
  %799 = vmatpush.bf16.msra.mxu0 %v613
  %800 = vmatpush.bf16.msra.mxu0 %v611
  %801 = vmatpush.bf16.msra.mxu0 %v609
  %802 = vmatpush.bf16.msra.mxu0 %v607
  %803 = vmatpush.bf16.msra.mxu0 %v605
  %804 = vmatpush.bf16.msra.mxu0 %v603
  %805 = vmatmul.bf16.gmra.mxu0 %v437
  %v806 = vpop.f32.mrf.mxu0
  %v807 = vadd.f32 %v758, %v806
  %v808 = vpop.f32.mrf.mxu0
  %v809 = vadd.f32 %v760, %v808
  %810 = vmatmul.bf16.gmra.mxu0 %v439
  %v811 = vpop.f32.mrf.mxu0
  %v812 = vadd.f32 %v763, %v811
  %v813 = vpop.f32.mrf.mxu0
  %v814 = vadd.f32 %v765, %v813
  %815 = vmatmul.bf16.gmra.mxu0 %v441
  %v816 = vpop.f32.mrf.mxu0
  %v817 = vadd.f32 %v768, %v816
  %v818 = vpop.f32.mrf.mxu0
  %v819 = vadd.f32 %v770, %v818
  %820 = vmatmul.bf16.gmra.mxu0 %v443
  %v821 = vpop.f32.mrf.mxu0
  %v822 = vadd.f32 %v773, %v821
  %v823 = vpop.f32.mrf.mxu0
  %v824 = vadd.f32 %v775, %v823
  %825 = vmatmul.bf16.gmra.mxu0 %v445
  %v826 = vpop.f32.mrf.mxu0
  %v827 = vadd.f32 %v778, %v826
  %v828 = vpop.f32.mrf.mxu0
  %v829 = vadd.f32 %v780, %v828
  %830 = vmatmul.bf16.gmra.mxu0 %v447
  %v831 = vpop.f32.mrf.mxu0
  %v832 = vadd.f32 %v783, %v831
  %v833 = vpop.f32.mrf.mxu0
  %v834 = vadd.f32 %v785, %v833
  %835 = vmatmul.bf16.gmra.mxu0 %v449
  %v836 = vpop.f32.mrf.mxu0
  %v837 = vadd.f32 %v788, %v836
  %v838 = vpop.f32.mrf.mxu0
  %v839 = vadd.f32 %v790, %v838
  %840 = vmatmul.bf16.gmra.mxu0 %v451
  %v841 = vpop.f32.mrf.mxu0
  %v842 = vadd.f32 %v793, %v841
  %v843 = vpop.f32.mrf.mxu0
  %v844 = vadd.f32 %v795, %v843
  %845 = vdwg.mxu0
  %v846 = vmax.f32 %v709, 0.0
  %v847 = vmax.f32 %v807, 0.0
  %v848 = vmax.f32 %v711, 0.0
  %v849 = vmax.f32 %v809, 0.0
  %v850 = vmax.f32 %v714, 0.0
  %v851 = vmax.f32 %v812, 0.0
  %v852 = vmax.f32 %v716, 0.0
  %v853 = vmax.f32 %v814, 0.0
  %v854 = vmax.f32 %v719, 0.0
  %v855 = vmax.f32 %v817, 0.0
  %v856 = vmax.f32 %v721, 0.0
  %v857 = vmax.f32 %v819, 0.0
  %v858 = vmax.f32 %v724, 0.0
  %v859 = vmax.f32 %v822, 0.0
  %v860 = vmax.f32 %v726, 0.0
  %v861 = vmax.f32 %v824, 0.0
  %v862 = vmax.f32 %v729, 0.0
  %v863 = vmax.f32 %v827, 0.0
  %v864 = vmax.f32 %v731, 0.0
  %v865 = vmax.f32 %v829, 0.0
  %v866 = vmax.f32 %v734, 0.0
  %v867 = vmax.f32 %v832, 0.0
  %v868 = vmax.f32 %v736, 0.0
  %v869 = vmax.f32 %v834, 0.0
  %v870 = vmax.f32 %v739, 0.0
  %v871 = vmax.f32 %v837, 0.0
  %v872 = vmax.f32 %v741, 0.0
  %v873 = vmax.f32 %v839, 0.0
  %v874 = vmax.f32 %v744, 0.0
  %v875 = vmax.f32 %v842, 0.0
  %v876 = vmax.f32 %v746, 0.0
  %v877 = vmax.f32 %v844, 0.0
  %v878 = vpack.c.bf16 %v848, %v846
  %v879 = vpack.c.bf16 %v849, %v847
  %v880 = vpack.c.bf16 %v852, %v850
  %v881 = vpack.c.bf16 %v853, %v851
  %v882 = vpack.c.bf16 %v856, %v854
  %v883 = vpack.c.bf16 %v857, %v855
  %v884 = vpack.c.bf16 %v860, %v858
  %v885 = vpack.c.bf16 %v861, %v859
  %v886 = vpack.c.bf16 %v864, %v862
  %v887 = vpack.c.bf16 %v865, %v863
  %v888 = vpack.c.bf16 %v868, %v866
  %v889 = vpack.c.bf16 %v869, %v867
  %v890 = vpack.c.bf16 %v872, %v870
  %v891 = vpack.c.bf16 %v873, %v871
  %v892 = vpack.c.bf16 %v876, %v874
  %v893 = vpack.c.bf16 %v877, %v875
  %v894 = vld [vmem:[%s7] sm:$0xf]
  %v895 = vld [vmem:[%s7 + $0x4] sm:$0xf]
  %v896 = vld [vmem:[%s7 + $0x8] sm:$0xf]
  %v897 = vld [vmem:[%s7 + $0xc] sm:$0xf]
  %v898 = vld [vmem:[%s7 + $0x10] sm:$0xf]
  %v899 = vld [vmem:[%s7 + $0x14] sm:$0xf]
  %v900 = vld [vmem:[%s7 + $0x18] sm:$0xf]
  %v901 = vld [vmem:[%s7 + $0x1c] sm:$0xf]
  %v902 = vld [vmem:[%s7 + $0x20] sm:$0xf]
  %v903 = vld [vmem:[%s7 + $0x24] sm:$0xf]
  %v904 = vld [vmem:[%s7 + $0x28] sm:$0xf]
  %v905 = vld [vmem:[%s7 + $0x2c] sm:$0xf]
  %v906 = vld [vmem:[%s7 + $0x30] sm:$0xf]
  %v907 = vld [vmem:[%s7 + $0x34] sm:$0xf]
  %v908 = vld [vmem:[%s7 + $0x38] sm:$0xf]
  %v909 = vld [vmem:[%s7 + $0x3c] sm:$0xf]
  %v910 = vld [vmem:[%s7 + $0x40] sm:$0xf]
  %v911 = vld [vmem:[%s7 + $0x44] sm:$0xf]
  %v912 = vld [vmem:[%s7 + $0x48] sm:$0xf]
  %v913 = vld [vmem:[%s7 + $0x4c] sm:$0xf]
  %v914 = vld [vmem:[%s7 + $0x50] sm:$0xf]
  %v915 = vld [vmem:[%s7 + $0x54] sm:$0xf]
  %v916 = vld [vmem:[%s7 + $0x58] sm:$0xf]
  %v917 = vld [vmem:[%s7 + $0x5c] sm:$0xf]
  %v918 = vld [vmem:[%s7 + $0x60] sm:$0xf]
  %v919 = vld [vmem:[%s7 + $0x64] sm:$0xf]
  %v920 = vld [vmem:[%s7 + $0x68] sm:$0xf]
  %v921 = vld [vmem:[%s7 + $0x6c] sm:$0xf]
  %v922 = vld [vmem:[%s7 + $0x70] sm:$0xf]
  %v923 = vld [vmem:[%s7 + $0x74] sm:$0xf]
  %v924 = vld [vmem:[%s7 + $0x78] sm:$0xf]
  %v925 = vld [vmem:[%s7 + $0x7c] sm:$0xf]
  %v958 = vunpack.c.l.b16 %v894
  %v959 = vunpack.c.l.b16 %v895
  %v960 = vunpack.c.l.b16 %v896
  %v961 = vunpack.c.l.b16 %v897
  %v962 = vunpack.c.l.b16 %v898
  %v963 = vunpack.c.l.b16 %v899
  %v964 = vunpack.c.l.b16 %v900
  %v965 = vunpack.c.l.b16 %v901
  %v966 = vunpack.c.l.b16 %v902
  %v967 = vunpack.c.l.b16 %v903
  %v968 = vunpack.c.l.b16 %v904
  %v969 = vunpack.c.l.b16 %v905
  %v970 = vunpack.c.l.b16 %v906
  %v971 = vunpack.c.l.b16 %v907
  %v972 = vunpack.c.l.b16 %v908
  %v973 = vunpack.c.l.b16 %v909
  %v974 = vunpack.c.l.b16 %v910
  %v975 = vunpack.c.l.b16 %v911
  %v976 = vunpack.c.l.b16 %v912
  %v977 = vunpack.c.l.b16 %v913
  %v978 = vunpack.c.l.b16 %v914
  %v979 = vunpack.c.l.b16 %v915
  %v980 = vunpack.c.l.b16 %v916
  %v981 = vunpack.c.l.b16 %v917
  %v982 = vunpack.c.l.b16 %v918
  %v983 = vunpack.c.l.b16 %v919
  %v984 = vunpack.c.l.b16 %v920
  %v985 = vunpack.c.l.b16 %v921
  %v986 = vunpack.c.l.b16 %v922
  %v987 = vunpack.c.l.b16 %v923
  %v988 = vunpack.c.l.b16 %v924
  %v989 = vunpack.c.l.b16 %v925
  %v990 = vpack.c.b16 %v959, %v958
  %v991 = vpack.c.b16 %v961, %v960
  %v992 = vpack.c.b16 %v963, %v962
  %v993 = vpack.c.b16 %v965, %v964
  %v994 = vpack.c.b16 %v967, %v966
  %v995 = vpack.c.b16 %v969, %v968
  %v996 = vpack.c.b16 %v971, %v970
  %v997 = vpack.c.b16 %v973, %v972
  %v998 = vpack.c.b16 %v975, %v974
  %v999 = vpack.c.b16 %v977, %v976
  %v1000 = vpack.c.b16 %v979, %v978
  %v1001 = vpack.c.b16 %v981, %v980
  %v1002 = vpack.c.b16 %v983, %v982
  %v1003 = vpack.c.b16 %v985, %v984
  %v1004 = vpack.c.b16 %v987, %v986
  %v1005 = vpack.c.b16 %v989, %v988
  %1022 = vmatpush.bf16.msra.mxu0 %v997
  %1023 = vmatpush.bf16.msra.mxu0 %v996
  %1024 = vmatpush.bf16.msra.mxu0 %v995
  %1025 = vmatpush.bf16.msra.mxu0 %v994
  %1026 = vmatpush.bf16.msra.mxu0 %v993
  %1027 = vmatpush.bf16.msra.mxu0 %v992
  %1028 = vmatpush.bf16.msra.mxu0 %v991
  %1029 = vmatpush.bf16.msra.mxu0 %v990
  %1030 = vmatmul.bf16.gmra.mxu0 %v878
  %v1031 = vpop.f32.mrf.mxu0
  %v1032 = vadd.f32 0.0, %v1031
  %v1033 = vpop.f32.mrf.mxu0
  %v1034 = vadd.f32 0.0, %v1033
  %1035 = vmatmul.bf16.gmra.mxu0 %v880
  %v1036 = vpop.f32.mrf.mxu0
  %v1037 = vadd.f32 0.0, %v1036
  %v1038 = vpop.f32.mrf.mxu0
  %v1039 = vadd.f32 0.0, %v1038
  %1040 = vmatmul.bf16.gmra.mxu0 %v882
  %v1041 = vpop.f32.mrf.mxu0
  %v1042 = vadd.f32 0.0, %v1041
  %v1043 = vpop.f32.mrf.mxu0
  %v1044 = vadd.f32 0.0, %v1043
  %1045 = vmatmul.bf16.gmra.mxu0 %v884
  %v1046 = vpop.f32.mrf.mxu0
  %v1047 = vadd.f32 0.0, %v1046
  %v1048 = vpop.f32.mrf.mxu0
  %v1049 = vadd.f32 0.0, %v1048
  %1050 = vmatmul.bf16.gmra.mxu0 %v886
  %v1051 = vpop.f32.mrf.mxu0
  %v1052 = vadd.f32 0.0, %v1051
  %v1053 = vpop.f32.mrf.mxu0
  %v1054 = vadd.f32 0.0, %v1053
  %1055 = vmatmul.bf16.gmra.mxu0 %v888
  %v1056 = vpop.f32.mrf.mxu0
  %v1057 = vadd.f32 0.0, %v1056
  %v1058 = vpop.f32.mrf.mxu0
  %v1059 = vadd.f32 0.0, %v1058
  %1060 = vmatmul.bf16.gmra.mxu0 %v890
  %v1061 = vpop.f32.mrf.mxu0
  %v1062 = vadd.f32 0.0, %v1061
  %v1063 = vpop.f32.mrf.mxu0
  %v1064 = vadd.f32 0.0, %v1063
  %1065 = vmatmul.bf16.gmra.mxu0 %v892
  %v1066 = vpop.f32.mrf.mxu0
  %v1067 = vadd.f32 0.0, %v1066
  %v1068 = vpop.f32.mrf.mxu0
  %v1069 = vadd.f32 0.0, %v1068
  %1070 = vdwg.mxu0
  %1071 = vmatpush.bf16.msra.mxu0 %v1005
  %1072 = vmatpush.bf16.msra.mxu0 %v1004
  %1073 = vmatpush.bf16.msra.mxu0 %v1003
  %1074 = vmatpush.bf16.msra.mxu0 %v1002
  %1075 = vmatpush.bf16.msra.mxu0 %v1001
  %1076 = vmatpush.bf16.msra.mxu0 %v1000
  %1077 = vmatpush.bf16.msra.mxu0 %v999
  %1078 = vmatpush.bf16.msra.mxu0 %v998
  %1079 = vmatmul.bf16.gmra.mxu0 %v879
  %v1080 = vpop.f32.mrf.mxu0
  %v1081 = vadd.f32 %v1032, %v1080
  %v1082 = vpop.f32.mrf.mxu0
  %v1083 = vadd.f32 %v1034, %v1082
  %1084 = vmatmul.bf16.gmra.mxu0 %v881
  %v1085 = vpop.f32.mrf.mxu0
  %v1086 = vadd.f32 %v1037, %v1085
  %v1087 = vpop.f32.mrf.mxu0
  %v1088 = vadd.f32 %v1039, %v1087
  %1089 = vmatmul.bf16.gmra.mxu0 %v883
  %v1090 = vpop.f32.mrf.mxu0
  %v1091 = vadd.f32 %v1042, %v1090
  %v1092 = vpop.f32.mrf.mxu0
  %v1093 = vadd.f32 %v1044, %v1092
  %1094 = vmatmul.bf16.gmra.mxu0 %v885
  %v1095 = vpop.f32.mrf.mxu0
  %v1096 = vadd.f32 %v1047, %v1095
  %v1097 = vpop.f32.mrf.mxu0
  %v1098 = vadd.f32 %v1049, %v1097
  %1099 = vmatmul.bf16.gmra.mxu0 %v887
  %v1100 = vpop.f32.mrf.mxu0
  %v1101 = vadd.f32 %v1052, %v1100
  %v1102 = vpop.f32.mrf.mxu0
  %v1103 = vadd.f32 %v1054, %v1102
  %1104 = vmatmul.bf16.gmra.mxu0 %v889
  %v1105 = vpop.f32.mrf.mxu0
  %v1106 = vadd.f32 %v1057, %v1105
  %v1107 = vpop.f32.mrf.mxu0
  %v1108 = vadd.f32 %v1059, %v1107
  %1109 = vmatmul.bf16.gmra.mxu0 %v891
  %v1110 = vpop.f32.mrf.mxu0
  %v1111 = vadd.f32 %v1062, %v1110
  %v1112 = vpop.f32.mrf.mxu0
  %v1113 = vadd.f32 %v1064, %v1112
  %1114 = vmatmul.bf16.gmra.mxu0 %v893
  %v1115 = vpop.f32.mrf.mxu0
  %v1116 = vadd.f32 %v1067, %v1115
  %v1117 = vpop.f32.mrf.mxu0
  %v1118 = vadd.f32 %v1069, %v1117
  %1119 = vdwg.mxu0
  %1120 = vxpose.xlu0.b32.start [1/16] %v1081, 128
  %1121 = vxpose.xlu0.b32.cont [2/16] %v1083, 128
  %1122 = vxpose.xlu0.b32.cont [3/16] %v1086, 128
  %1123 = vxpose.xlu0.b32.cont [4/16] %v1088, 128
  %1124 = vxpose.xlu0.b32.cont [5/16] %v1091, 128
  %1125 = vxpose.xlu0.b32.cont [6/16] %v1093, 128
  %1126 = vxpose.xlu0.b32.cont [7/16] %v1096, 128
  %1127 = vxpose.xlu0.b32.cont [8/16] %v1098, 128
  %1128 = vxpose.xlu0.b32.cont [9/16] %v1101, 128
  %1129 = vxpose.xlu0.b32.cont [10/16] %v1103, 128
  %1130 = vxpose.xlu0.b32.cont [11/16] %v1106, 128
  %1131 = vxpose.xlu0.b32.cont [12/16] %v1108, 128
  %1132 = vxpose.xlu0.b32.cont [13/16] %v1111, 128
  %1133 = vxpose.xlu0.b32.cont [14/16] %v1113, 128
  %1134 = vxpose.xlu0.b32.cont [15/16] %v1116, 128
  %1135 = vxpose.xlu0.b32.end [16/16] %v1118, 128
  %v1136 = vpop.trf.xlu0
  %v1137 = vpop.trf.xlu0
  %v1138 = vpop.trf.xlu0
  %v1139 = vpop.trf.xlu0
  %v1140 = vpop.trf.xlu0
  %v1141 = vpop.trf.xlu0
  %v1142 = vpop.trf.xlu0
  %v1143 = vpop.trf.xlu0
  %v1144 = vpop.trf.xlu0
  %v1145 = vpop.trf.xlu0
  %v1146 = vpop.trf.xlu0
  %v1147 = vpop.trf.xlu0
  %v1148 = vpop.trf.xlu0
  %v1149 = vpop.trf.xlu0
  %v1150 = vpop.trf.xlu0
  %v1151 = vpop.trf.xlu0
  %v1152 = vld [vmem:[#allocation2] sm:$0x1]
  %1154 = vset.pattern.permute.xlu0 0
  %1155 = vperm.xlu0 %1154, %v1152
  %v1156 = vpop.permute.xlu0 %1155
  %v1158 = vperm.slane %v1156, 0
  %v1159 = vadd.f32 %v1136, %v1158
  %1160 = vst [vmem:[%s9] sm:$0x1] %v1159
  // Predicated region
  $region38: #{reward_model_forward.1} parent=0 // pred_check
    _
  $region39: #{reward_model_forward.1} parent=0 // pred_check_branch
    %1162 = sbr.rel (0) target = $region41
  $region40: #{reward_model_forward.1} parent=0 // pred_region
    _
  $region41: #{reward_model_forward.1} parent=0 // pred_fallthru
    _
  // Predicated region
  $region42: #{reward_model_forward.1} parent=0 // pred_check
    _
  $region43: #{reward_model_forward.1} parent=0 // pred_check_branch
    %1164 = sbr.rel (0) target = $region45
  $region44: #{reward_model_forward.1} parent=0 // pred_region
    _
  $region45: #{reward_model_forward.1} parent=0 // pred_fallthru
    _

</llo_original>
